<compile_context>
chip_gen: v7x
topology: tpu7x:2x2x1
jax: 0.10.0
libtpu: 0.0.40
codegen_flags: <defaults>
</compile_context>

<pallas_src>
import functools
import warnings

import jax
import jax.numpy as jnp
from jax.experimental import pallas as pl
from jax.experimental.pallas import tpu as pltpu


# ------------------------------- helpers ------------------------------------

def _round_up(x, m):
    return ((x + m - 1) // m) * m


def _block_vmem_bytes(shape, dtype):
    """VMEM bytes of ONE buffer of this block (last two dims padded to (8,128))."""
    shape = list(shape)
    if len(shape) >= 2:
        shape[-2] = _round_up(shape[-2], 8)
    shape[-1] = _round_up(shape[-1], 128)
    n = 1
    for s in shape:
        n *= int(s)
    return n * jnp.dtype(dtype).itemsize


def _maybe_vmem_limit(footprint_bytes):
    """Explicit vmem_limit_bytes only when the most conservative default scoped
    limit (16 MiB on v5e) would not hold the footprint; clamped to physical."""
    if footprint_bytes + (2 << 20) <= (16 << 20):
        return None
    try:
        cap = pltpu.get_tpu_info().vmem_capacity_bytes  # 128 MiB v5e/v6e, 64 MiB v7x
    except Exception:
        cap = 64 << 20                                  # v7x physical (smallest)
    return int(min(footprint_bytes + (4 << 20), cap - (4 << 20)))


def _pick_tile_n2(n2_pad, c_out, itemsize, budget_bytes=2 << 20):
    """Largest multiple-of-128 divisor of n2_pad with c_out*tile*itemsize <= ~2 MiB.
    n2_pad is always a multiple of 128, so tile=128 is always a valid fallback."""
    max_lanes = max(128, ((budget_bytes // max(c_out * itemsize, 1)) // 128) * 128)
    t = min(n2_pad, max_lanes)
    t = max(128, (t // 128) * 128)
    while t > 128 and n2_pad % t != 0:
        t -= 128
    return t


# ------------------------------- kernels ------------------------------------

def _context_transform_kernel(fs_ref, wctx_ref, w1t_ref, w2_ref, t_ref, *, n_valid):
    # fs_ref : (1, C_in, N_pad)   wctx : (C_in, 1)   w1t : (C_in, C_mid)
    # w2     : (C_out, C_mid)     t_ref: (1, C_out, 1) float32
    fs = fs_ref[0].astype(jnp.float32)                       # (C_in, N_pad)
    wctx = wctx_ref[...].astype(jnp.float32)                 # (C_in, 1)

    # 1x1 conv C_in -> 1: VPU broadcast-mul + sublane reduce (MXU not worth it).
    logits = jnp.sum(wctx * fs, axis=0, keepdims=True)       # (1, N_pad)
    if n_valid < fs.shape[-1]:                               # mask lane padding
        lane = jax.lax.broadcasted_iota(jnp.int32, logits.shape, 1)
        logits = jnp.where(lane < n_valid, logits, -jnp.inf)

    # softmax over the (masked) spatial axis — runs once per batch, keep exact.
    m = jnp.max(logits, axis=-1, keepdims=True)
    p = jnp.exp(logits - m)
    s = jnp.sum(p, axis=-1, keepdims=True)
    context = p / s                                          # (1, N_pad)

    # einsum('bin,bcn->bci'): context-weighted spatial pooling -> (C_in, 1)
    pooled = jnp.sum(fs * context, axis=-1, keepdims=True)

    # transform: 1x1 conv -> LeakyReLU(0.2) -> 1x1 conv (spatial extent is 1)
    w1t = w1t_ref[...].astype(jnp.float32)                   # (C_in, C_mid)
    h = jnp.sum(w1t * pooled, axis=0, keepdims=True)         # (1, C_mid)
    h = jnp.where(h >= 0, h, 0.2 * h)
    w2 = w2_ref[...].astype(jnp.float32)                     # (C_out, C_mid)
    t_ref[0] = jnp.sum(w2 * h, axis=-1, keepdims=True)       # (C_out, 1)


def _residual_kernel(t_ref, fb_ref, out_ref):
    # t_ref: (1, C_out, 1) f32, resident across the spatial axis (tiny).
    # fb_ref / out_ref: (1, C_out, TILE_N2) in the native feature dtype.
    t = t_ref[0].astype(out_ref.dtype)       # cast C_out values, not the big tile
    out_ref[0] = fb_ref[0] + t                # native-dtype streaming residual add


# ------------------------------- wrapper ------------------------------------

def sgc_block(feat_small, feat_big, w_ctx, w1, w2):
    """feat_small: (B, C_in, H, W), feat_big: (B, C_out, H2, W2) -> (B, C_out, H2, W2)."""
    B, C_in, H, W = feat_small.shape
    B2, C_out, H2, W2 = feat_big.shape
    assert B == B2
    N, N2 = H * W, H2 * W2
    C_mid = w1.shape[0]

    # ---- lane-dense layouts -------------------------------------------------
    fs = feat_small.reshape(B, C_in, N)
    N_pad = _round_up(N, 128)                # padded lanes are -inf-masked in-kernel
    if N_pad != N:
        fs = jnp.pad(fs, ((0, 0), (0, 0), (0, N_pad - N)))

    fb = feat_big.reshape(B, C_out, N2)
    N2_pad = _round_up(N2, 128)              # every stored tile stays lane-dense
    if N2_pad != N2:
        fb = jnp.pad(fb, ((0, 0), (0, 0), (0, N2_pad - N2)))

    # Weight layouts so every in-kernel contraction is broadcast-mul + reduce.
    wctx_t = w_ctx.reshape(1, C_in).T        # (C_in, 1)
    w1t = w1.T                               # (C_in, C_mid)
    # w2 stays (C_out, C_mid)

    # ---- kernel A: context/softmax/transform, ONCE per batch ----------------
    # TODO(synk): if C_in * N_pad itself approaches tens of MiB, additionally tile
    # N and use an online (running max/sum) softmax inside this kernel.
    a_blocks = [((1, C_in, N_pad), fs.dtype), ((C_in, 1), wctx_t.dtype),
                ((C_in, C_mid), w1t.dtype), ((C_out, C_mid), w2.dtype),
                ((1, C_out, 1), jnp.float32)]
    a_footprint = 2 * sum(_block_vmem_bytes(s, d) for s, d in a_blocks)

    t = pl.pallas_call(
        functools.partial(_context_transform_kernel, n_valid=N),
        out_shape=jax.ShapeDtypeStruct((B, C_out, 1), jnp.float32),
        grid_spec=pltpu.PrefetchScalarGridSpec(
            num_scalar_prefetch=0,
            grid=(B,),
            in_specs=[
                pl.BlockSpec((1, C_in, N_pad), lambda b: (b, 0, 0)),
                pl.BlockSpec((C_in, 1), lambda b: (0, 0)),
                pl.BlockSpec((C_in, C_mid), lambda b: (0, 0)),
                pl.BlockSpec((C_out, C_mid), lambda b: (0, 0)),
            ],
            out_specs=pl.BlockSpec((1, C_out, 1), lambda b: (b, 0, 0)),
        ),
        compiler_params=pltpu.CompilerParams(
            dimension_semantics=("parallel",),
            vmem_limit_bytes=_maybe_vmem_limit(a_footprint)),
    )(fs, wctx_t, w1t, w2)

    # ---- kernel B: pure HBM-roofline residual stream ------------------------
    tile_n2 = _pick_tile_n2(N2_pad, C_out, jnp.dtype(feat_big.dtype).itemsize)
    grid = (B, N2_pad // tile_n2)

    out = pl.pallas_call(
        _residual_kernel,
        out_shape=jax.ShapeDtypeStruct((B, C_out, N2_pad), feat_big.dtype),
        grid_spec=pltpu.PrefetchScalarGridSpec(
            num_scalar_prefetch=0,
            grid=grid,
            in_specs=[
                # t: tiny, resident across the spatial axis (only re-DMA'd per batch)
                pl.BlockSpec((1, C_out, 1), lambda b, n: (b, 0, 0)),
                # feat_big: streamed in lane-dense ~2 MiB tiles
                pl.BlockSpec((1, C_out, tile_n2), lambda b, n: (b, 0, n)),
            ],
            out_specs=pl.BlockSpec((1, C_out, tile_n2), lambda b, n: (b, 0, n)),
        ),
        # Residual add is in place: the output aliases feat_big (operand 1).
        # Pair with donate_argnums at the jit boundary so XLA skips the copy.
        input_output_aliases={1: 0},
        compiler_params=pltpu.CompilerParams(
            dimension_semantics=("parallel", "parallel")),
    )(t, fb)

    if N2_pad != N2:
        out = out[:, :, :N2]
    return out.reshape(B, C_out, H2, W2)


# ------------------------ params / reference / main --------------------------

def spectral_normalize(w2d, eps=1e-4):
    # Converged spectral norm: divide the (out, in) weight matrix by its largest
    # singular value (what PyTorch's power iteration converges to).
    sigma = jnp.linalg.svd(w2d, compute_uv=False)[0]
    return w2d / (sigma + eps)


def make_params(key, ch_in, ch_out, r=4):
    c_mid = ch_out // r
    k0, k1, k2 = jax.random.split(key, 3)
    # 1x1 conv weights, stored as (out_ch, in_ch) matrices (kernel dims squeezed).
    w_ctx = spectral_normalize(jax.random.normal(k0, (1, ch_in), jnp.float32) * 0.5)
    w1 = spectral_normalize(jax.random.normal(k1, (c_mid, ch_in), jnp.float32) * 0.5)
    w2 = spectral_normalize(jax.random.normal(k2, (ch_out, c_mid), jnp.float32) * 0.5)
    return w_ctx, w1, w2


def sgc_block_ref(feat_small, feat_big, w_ctx, w1, w2):
    # Pure-JAX reference for correctness checking.
    B, C_in, H, W = feat_small.shape
    fs = feat_small.reshape(B, C_in, H * W)
    logits = jnp.einsum('oc,bcn->bon', w_ctx, fs)                # (B,1,N)
    context = jax.nn.softmax(logits, axis=-1)
    pooled = jnp.einsum('bin,bcn->bci', context, fs)             # (B,C_in,1)
    h = jnp.einsum('mc,bci->bmi', w1, pooled)
    h = jnp.where(h >= 0, h, 0.2 * h)
    t = jnp.einsum('om,bmi->boi', w2, h)                         # (B,C_out,1)
    return feat_big + t[..., None]


if __name__ == "__main__":
    warnings.filterwarnings("ignore", message=".*donat.*")

    B, ch_in, ch_out, r = 2, 8, 16, 4
    H = W = 8          # feat_small spatial
    H2 = W2 = 16       # feat_big spatial

    key = jax.random.PRNGKey(0)
    k_fs, k_fb, k_w = jax.random.split(key, 3)
    feat_small = jax.random.normal(k_fs, (B, ch_in, H, W), jnp.float32)
    feat_big = jax.random.normal(k_fb, (B, ch_out, H2, W2), jnp.float32)
    w_ctx, w1, w2 = make_params(k_w, ch_in, ch_out, r)

    # Compute the pure-JAX reference BEFORE calling the kernel: feat_big is
    # donated so its buffer is invalid afterwards.
    ref = jax.block_until_ready(sgc_block_ref(feat_small, feat_big, w_ctx, w1, w2))

    sgc = jax.jit(sgc_block, donate_argnums=1)   # honor the in-place residual alias
    out = jax.block_until_ready(sgc(feat_small, feat_big, w_ctx, w1, w2))

    assert out.shape == (B, ch_out, H2, W2)
    assert jnp.allclose(out, ref, atol=1e-5, rtol=1e-5), "mismatch vs reference"
    print("KERNEL_OK")
</pallas_src>

<mosaic_0001>
module attributes {stable_mosaic.version = 11 : i64} {
  func.func @_residual_kernel(%arg0: i32, %arg1: i32, %arg2: memref<1x16x1xf32, #tpu.memory_space<vmem>>, %arg3: memref<1x16x256xf32, #tpu.memory_space<vmem>>, %arg4: memref<1x16x256xf32, #tpu.memory_space<vmem>>) attributes {dimension_semantics = [#tpu.dimension_semantics<parallel>, #tpu.dimension_semantics<parallel>], iteration_bounds = array<i64: 2, 1>, scalar_prefetch = 0 : i64, scratch_operands = 0 : i64, tpu.core_type = #tpu.core_type<tc>, window_params = [{transform_indices = @transform_0, window_bounds = array<i64: 1, 16, 1>}, {transform_indices = @transform_1, window_bounds = array<i64: 1, 16, 256>}, {transform_indices = @transform_2, window_bounds = array<i64: 1, 16, 256>}]} {
    %c0 = arith.constant 0 : index
    %c0_0 = arith.constant 0 : index
    %c0_1 = arith.constant 0 : index
    %0 = vector.load %arg2[%c0, %c0_0, %c0_1] : memref<1x16x1xf32, #tpu.memory_space<vmem>>, vector<1x16x1xf32>
    %1 = vector.shape_cast %0 : vector<1x16x1xf32> to vector<16x1xf32>
    %c0_2 = arith.constant 0 : index
    %c0_3 = arith.constant 0 : index
    %c0_4 = arith.constant 0 : index
    %2 = vector.load %arg3[%c0_2, %c0_3, %c0_4] : memref<1x16x256xf32, #tpu.memory_space<vmem>>, vector<1x16x256xf32>
    %3 = vector.shape_cast %2 : vector<1x16x256xf32> to vector<16x256xf32>
    %4 = vector.broadcast %1 : vector<16x1xf32> to vector<16x256xf32>
    %5 = arith.addf %3, %4 : vector<16x256xf32>
    %c0_5 = arith.constant 0 : index
    %c0_6 = arith.constant 0 : index
    %c0_7 = arith.constant 0 : index
    %6 = vector.load %arg4[%c0_5, %c0_6, %c0_7] : memref<1x16x256xf32, #tpu.memory_space<vmem>>, vector<1x16x256xf32>
    %7 = vector.shape_cast %6 : vector<1x16x256xf32> to vector<16x256xf32>
    %8 = vector.shape_cast %5 : vector<16x256xf32> to vector<1x16x256xf32>
    tpu.vector_store %arg4[%c0_5, %c0_6, %c0_7], %8 {strides = array<i32>} : memref<1x16x256xf32, #tpu.memory_space<vmem>>, vector<1x16x256xf32>,
    return
  }
  func.func @transform_0(%arg0: i32, %arg1: i32) -> (i32, i32, i32) {
    %c0_i32 = arith.constant 0 : i32
    %c0_i32_0 = arith.constant 0 : i32
    %c0_i32_1 = arith.constant 0 : i32
    return %arg0, %c0_i32, %c0_i32_0 : i32, i32, i32
  }
  func.func @transform_1(%arg0: i32, %arg1: i32) -> (i32, i32, i32) {
    %c0_i32 = arith.constant 0 : i32
    %c0_i32_0 = arith.constant 0 : i32
    return %arg0, %c0_i32, %arg1 : i32, i32, i32
  }
  func.func @transform_2(%arg0: i32, %arg1: i32) -> (i32, i32, i32) {
    %c0_i32 = arith.constant 0 : i32
    %c0_i32_0 = arith.constant 0 : i32
    return %arg0, %c0_i32, %arg1 : i32, i32, i32
  }
}

module attributes {stable_mosaic.version = 11 : i64} {
  func.func @_context_transform_kernel(%arg0: i32, %arg1: memref<1x8x128xf32, #tpu.memory_space<vmem>>, %arg2: memref<8x1xf32, #tpu.memory_space<vmem>>, %arg3: memref<8x4xf32, #tpu.memory_space<vmem>>, %arg4: memref<16x4xf32, #tpu.memory_space<vmem>>, %arg5: memref<1x16x1xf32, #tpu.memory_space<vmem>>) attributes {dimension_semantics = [#tpu.dimension_semantics<parallel>], iteration_bounds = array<i64: 2>, scalar_prefetch = 0 : i64, scratch_operands = 0 : i64, tpu.core_type = #tpu.core_type<tc>, window_params = [{transform_indices = @transform_0, window_bounds = array<i64: 1, 8, 128>}, {pipeline_mode = #tpu.pipeline_mode<synchronous>, transform_indices = @transform_1, window_bounds = array<i64: 8, 1>}, {pipeline_mode = #tpu.pipeline_mode<synchronous>, transform_indices = @transform_2, window_bounds = array<i64: 8, 4>}, {pipeline_mode = #tpu.pipeline_mode<synchronous>, transform_indices = @transform_3, window_bounds = array<i64: 16, 4>}, {transform_indices = @transform_4, window_bounds = array<i64: 1, 16, 1>}]} {
    %c0 = arith.constant 0 : index
    %c0_0 = arith.constant 0 : index
    %c0_1 = arith.constant 0 : index
    %0 = vector.load %arg1[%c0, %c0_0, %c0_1] : memref<1x8x128xf32, #tpu.memory_space<vmem>>, vector<1x8x128xf32>
    %1 = vector.shape_cast %0 : vector<1x8x128xf32> to vector<8x128xf32>
    %c0_2 = arith.constant 0 : index
    %c0_3 = arith.constant 0 : index
    %2 = vector.load %arg2[%c0_2, %c0_3] : memref<8x1xf32, #tpu.memory_space<vmem>>, vector<8x1xf32>
    %3 = vector.broadcast %2 : vector<8x1xf32> to vector<8x128xf32>
    %4 = arith.mulf %3, %1 : vector<8x128xf32>
    %cst = arith.constant dense<0.000000e+00> : vector<128xf32>
    %5 = vector.multi_reduction <add>, %4, %cst [0] : vector<8x128xf32> to vector<128xf32>
    %6 = vector.shape_cast %5 : vector<128xf32> to vector<1x128xf32>
    %7 = tpu.iota {dimensions = array<i32: 1>} : vector<1x128xi32>
    %c64_i32 = arith.constant 64 : i32
    %8 = vector.broadcast %c64_i32 : i32 to vector<1x128xi32>
    %9 = arith.cmpi slt, %7, %8 : vector<1x128xi32>
    %cst_4 = arith.constant 0xFF800000 : f32
    %10 = vector.broadcast %cst_4 : f32 to vector<1x128xf32>
    %11 = arith.select %9, %6, %10 : vector<1x128xi1>, vector<1x128xf32>
    %cst_5 = arith.constant dense<0xFF800000> : vector<1xf32>
    %12 = vector.multi_reduction <maximumf>, %11, %cst_5 [1] : vector<1x128xf32> to vector<1xf32>
    %13 = vector.shape_cast %12 : vector<1xf32> to vector<1x1xf32>
    %14 = vector.broadcast %13 : vector<1x1xf32> to vector<1x128xf32>
    %15 = arith.subf %11, %14 : vector<1x128xf32>
    %16 = math.exp %15 : vector<1x128xf32>
    %cst_6 = arith.constant dense<0.000000e+00> : vector<1xf32>
    %17 = vector.multi_reduction <add>, %16, %cst_6 [1] : vector<1x128xf32> to vector<1xf32>
    %18 = vector.shape_cast %17 : vector<1xf32> to vector<1x1xf32>
    %19 = vector.broadcast %18 : vector<1x1xf32> to vector<1x128xf32>
    %20 = arith.divf %16, %19 : vector<1x128xf32>
    %21 = vector.broadcast %20 : vector<1x128xf32> to vector<8x128xf32>
    %22 = arith.mulf %1, %21 : vector<8x128xf32>
    %cst_7 = arith.constant dense<0.000000e+00> : vector<8xf32>
    %23 = vector.multi_reduction <add>, %22, %cst_7 [1] : vector<8x128xf32> to vector<8xf32>
    %24 = vector.shape_cast %23 : vector<8xf32> to vector<8x1xf32>
    %c0_8 = arith.constant 0 : index
    %c0_9 = arith.constant 0 : index
    %25 = vector.load %arg3[%c0_8, %c0_9] : memref<8x4xf32, #tpu.memory_space<vmem>>, vector<8x4xf32>
    %26 = vector.broadcast %24 : vector<8x1xf32> to vector<8x4xf32>
    %27 = arith.mulf %25, %26 : vector<8x4xf32>
    %cst_10 = arith.constant dense<0.000000e+00> : vector<4xf32>
    %28 = vector.multi_reduction <add>, %27, %cst_10 [0] : vector<8x4xf32> to vector<4xf32>
    %29 = vector.shape_cast %28 : vector<4xf32> to vector<1x4xf32>
    %cst_11 = arith.constant 0.000000e+00 : f32
    %30 = vector.broadcast %cst_11 : f32 to vector<1x4xf32>
    %31 = arith.cmpf oge, %29, %30 : vector<1x4xf32>
    %cst_12 = arith.constant 2.000000e-01 : f32
    %32 = vector.broadcast %cst_12 : f32 to vector<1x4xf32>
    %33 = arith.mulf %32, %29 : vector<1x4xf32>
    %34 = arith.select %31, %29, %33 : vector<1x4xi1>, vector<1x4xf32>
    %c0_13 = arith.constant 0 : index
    %c0_14 = arith.constant 0 : index
    %35 = vector.load %arg4[%c0_13, %c0_14] : memref<16x4xf32, #tpu.memory_space<vmem>>, vector<16x4xf32>
    %36 = vector.broadcast %34 : vector<1x4xf32> to vector<16x4xf32>
    %37 = arith.mulf %35, %36 : vector<16x4xf32>
    %cst_15 = arith.constant dense<0.000000e+00> : vector<16xf32>
    %38 = vector.multi_reduction <add>, %37, %cst_15 [1] : vector<16x4xf32> to vector<16xf32>
    %39 = vector.shape_cast %38 : vector<16xf32> to vector<16x1xf32>
    %c0_16 = arith.constant 0 : index
    %c0_17 = arith.constant 0 : index
    %c0_18 = arith.constant 0 : index
    %40 = vector.load %arg5[%c0_16, %c0_17, %c0_18] : memref<1x16x1xf32, #tpu.memory_space<vmem>>, vector<1x16x1xf32>
    %41 = vector.shape_cast %40 : vector<1x16x1xf32> to vector<16x1xf32>
    %42 = vector.shape_cast %39 : vector<16x1xf32> to vector<1x16x1xf32>
    tpu.vector_store %arg5[%c0_16, %c0_17, %c0_18], %42 {strides = array<i32>} : memref<1x16x1xf32, #tpu.memory_space<vmem>>, vector<1x16x1xf32>,
    return
  }
  func.func @transform_0(%arg0: i32) -> (i32, i32, i32) {
    %c0_i32 = arith.constant 0 : i32
    %c0_i32_0 = arith.constant 0 : i32
    %c0_i32_1 = arith.constant 0 : i32
    return %arg0, %c0_i32, %c0_i32_0 : i32, i32, i32
  }
  func.func @transform_1(%arg0: i32) -> (i32, i32) {
    %c0_i32 = arith.constant 0 : i32
    %c0_i32_0 = arith.constant 0 : i32
    %c0_i32_1 = arith.constant 0 : i32
    return %c0_i32, %c0_i32_0 : i32, i32
  }
  func.func @transform_2(%arg0: i32) -> (i32, i32) {
    %c0_i32 = arith.constant 0 : i32
    %c0_i32_0 = arith.constant 0 : i32
    %c0_i32_1 = arith.constant 0 : i32
    return %c0_i32, %c0_i32_0 : i32, i32
  }
  func.func @transform_3(%arg0: i32) -> (i32, i32) {
    %c0_i32 = arith.constant 0 : i32
    %c0_i32_0 = arith.constant 0 : i32
    %c0_i32_1 = arith.constant 0 : i32
    return %c0_i32, %c0_i32_0 : i32, i32
  }
  func.func @transform_4(%arg0: i32) -> (i32, i32, i32) {
    %c0_i32 = arith.constant 0 : i32
    %c0_i32_0 = arith.constant 0 : i32
    %c0_i32_1 = arith.constant 0 : i32
    return %arg0, %c0_i32, %c0_i32_0 : i32, i32, i32
  }
}

</mosaic_0001>

<llo_original>
// kernel: sgc_block.3
$region0: #{sgc_block.3}
  #allocation0 [shape = 'u32[]', space=smem, size = 0x4, offset = 0x4, fixed_abs, tag = 'smem constant byte address 0x4 - core index']
  #allocation1 [shape = 'u32[144,128]{1,0:T(1,128)}', space=vmem, size = 0x12000, scoped, tag = 'internal scratch']
  %s0 = inlined_call_operand.vmem [shape: f32[2,16,1], index: 0, kind: input, shape index: {}]
  %s1 = inlined_call_operand.vmem [shape: f32[2,16,256], index: 1, kind: input, shape index: {}, may-alias: {1,2}]
  %s2 = inlined_call_operand.vmem [shape: f32[2,16,256], index: 2, kind: output, shape index: {}, may-alias: {1,2}]
  %s3 = sld [smem:[#allocation0]]
  $region41: #{sgc_block.3} parent=0
    _
  %s5 = ssub.s32 1, %s3
  %s6 = scalar_select 0, %s5, %s3
  loop: start=0, step=1, limit=4
  $region2: #{sgc_block.3} parent=0 // loop_pre_header
    _
  $region3: #{sgc_block.3} parent=0 // loop_header
    %s8 = sphi 0, %s12
    %p9 = scmp.ge.s32.totalorder %s8, 4
    %s15 = sphi 0, %s27
    %s16 = sphi 0, %s23
    %s17 = sphi 0, %s15
    %s18 = sphi 0, %s16
    %s19 = sphi 0, %s17
    %s20 = sphi 0, %s18
    %s30 = sphi 0, %s32
    %s33 = sphi 0, %s30
    %s34 = sphi 0, %s33
    %s50 = sphi 0, %s34
    %s58 = sphi 0, %s60
    %s61 = sphi 0, %s58
    %s62 = sphi 0, %s61
    %s78 = sphi 0, %s62
    %s86 = sphi 0, %s88
    %s89 = sphi 0, %s86
    %s90 = sphi 0, %s89
    %s106 = sphi 0, %s90
  $region4: #{sgc_block.3} parent=0 // loop_header_branch
    %11 = sbr.rel (%p9) target = $region8
  $region5: #{sgc_block.3} parent=0 // loop_body
    %s13 = ssub.s32 %s8, 1
    %s14 = ssub.s32 %s8, 2
    %s21 = sadd.s32 1, %s16
    %p22 = scmp.ge.s32.totalorder %s21, 1
    %s23 = scalar_select %p22, 0, %s21
    %s24 = sadd.s32 1, %s15
    %s25 = scalar_select %p22, %s24, %s15
    %p26 = scmp.ge.s32.totalorder %s25, 2
    %s27 = scalar_select %p26, 0, %s25
    %s28 = ssub.s32 %s15, %s27
    %p29 = scmp.eq.s32.totalorder %s28, 0
    %s31 = sadd.s32 %s30, 1
    %s32 = scalar_select %p29, %s30, %s31
    %p35 = pneg %p29
    %p36 = scmp.eq.s32.totalorder %s8, 1
    %p37 = por %p35, %p36
    %p38 = scmp.ne.s32.totalorder %s30, %s33
    %p39 = scmp.eq.s32.totalorder %s8, 0
    %p40 = por %p38, %p39
    %p41 = scmp.ne.s32.totalorder %s30, %s33
    %p42 = scmp.eq.s32.totalorder %s13, 1
    %p43 = por %p41, %p42
    %p44 = scmp.ne.s32.totalorder %s33, %s34
    %p45 = scmp.eq.s32.totalorder %s13, 0
    %p46 = por %p44, %p45
    %p47 = scmp.ne.s32.totalorder %s33, %s34
    %p48 = scmp.eq.s32.totalorder %s14, 1
    %p49 = por %p47, %p48
    %p51 = scmp.ne.s32.totalorder %s34, %s50
    %p52 = scmp.eq.s32.totalorder %s14, 0
    %p53 = por %p51, %p52
    %s54 = ssub.s32 %s15, %s27
    %s55 = ssub.s32 %s16, %s23
    %s56 = sor.u32 %s54, %s55
    %p57 = scmp.eq.s32.totalorder %s56, 0
    %s59 = sadd.s32 %s58, 1
    %s60 = scalar_select %p57, %s58, %s59
    %p63 = pneg %p57
    %p64 = scmp.eq.s32.totalorder %s8, 1
    %p65 = por %p63, %p64
    %p66 = scmp.ne.s32.totalorder %s58, %s61
    %p67 = scmp.eq.s32.totalorder %s8, 0
    %p68 = por %p66, %p67
    %p69 = scmp.ne.s32.totalorder %s58, %s61
    %p70 = scmp.eq.s32.totalorder %s13, 1
    %p71 = por %p69, %p70
    %p72 = scmp.ne.s32.totalorder %s61, %s62
    %p73 = scmp.eq.s32.totalorder %s13, 0
    %p74 = por %p72, %p73
    %p75 = scmp.ne.s32.totalorder %s61, %s62
    %p76 = scmp.eq.s32.totalorder %s14, 1
    %p77 = por %p75, %p76
    %p79 = scmp.ne.s32.totalorder %s62, %s78
    %p80 = scmp.eq.s32.totalorder %s14, 0
    %p81 = por %p79, %p80
    %s82 = ssub.s32 %s15, %s27
    %s83 = ssub.s32 %s16, %s23
    %s84 = sor.u32 %s82, %s83
    %p85 = scmp.eq.s32.totalorder %s84, 0
    %s87 = sadd.s32 %s86, 1
    %s88 = scalar_select %p85, %s86, %s87
    %p91 = pneg %p85
    %p92 = scmp.eq.s32.totalorder %s8, 1
    %p93 = por %p91, %p92
    %p94 = scmp.ne.s32.totalorder %s86, %s89
    %p95 = scmp.eq.s32.totalorder %s8, 0
    %p96 = por %p94, %p95
    %p97 = scmp.ne.s32.totalorder %s86, %s89
    %p98 = scmp.eq.s32.totalorder %s13, 1
    %p99 = por %p97, %p98
    %p100 = scmp.ne.s32.totalorder %s89, %s90
    %p101 = scmp.eq.s32.totalorder %s13, 0
    %p102 = por %p100, %p101
    %p103 = scmp.ne.s32.totalorder %s89, %s90
    %p104 = scmp.eq.s32.totalorder %s14, 1
    %p105 = por %p103, %p104
    %p107 = scmp.ne.s32.totalorder %s90, %s106
    %p108 = scmp.eq.s32.totalorder %s14, 0
    %p109 = por %p107, %p108
    %p110 = scmp.le.s32.totalorder 1, %s8
    %p111 = scmp.lt.s32.totalorder %s8, 3
    %p112 = pnand %p110, %p111
    %p113 = pneg %p112
    // Predicated region
    $region9: #{sgc_block.3} parent=5 // pred_check
      _
    $region10: #{sgc_block.3} parent=5 // pred_check_branch
      %115 = sbr.rel (%p112) target = $region12
    $region11: #{sgc_block.3} parent=5 // pred_region
      %s116 = ssub.s32 %s8, 1
    $region12: #{sgc_block.3} parent=5 // pred_fallthru
      _
    %p117 = scmp.lt.s32.totalorder %s8, 2
    // Predicated region
    $region13: #{sgc_block.3} parent=5 // pred_check
      %p118 = pneg %p117
    $region14: #{sgc_block.3} parent=5 // pred_check_branch
      %120 = sbr.rel (%p118) target = $region16
    $region15: #{sgc_block.3} parent=5 // pred_region
      // Predicated region
      $region17: #{sgc_block.3} parent=15 // pred_check
        %p121 = pneg %p40
      $region18: #{sgc_block.3} parent=15 // pred_check_branch
        %123 = sbr.rel (%p121) target = $region20
      $region19: #{sgc_block.3} parent=15 // pred_region
        %p124 = scmp.lt.s32.totalorder %s15, 1
        %s125 = scalar_select %p124, %s15, 1
        %s126 = smul.addr %s125, 2
        %s127 = smul.addr %s126, 8
        %s128 = scalar_lea.vmem %s0, %s127
      $region20: #{sgc_block.3} parent=15 // pred_fallthru
        _
      // Predicated region
      $region21: #{sgc_block.3} parent=15 // pred_check
        %p129 = pneg %p68
      $region22: #{sgc_block.3} parent=15 // pred_check_branch
        %131 = sbr.rel (%p129) target = $region24
      $region23: #{sgc_block.3} parent=15 // pred_region
        %s132 = smul.u32 2, %s16
        %p133 = scmp.lt.s32.totalorder %s15, 1
        %s134 = scalar_select %p133, %s15, 1
        %p135 = scmp.lt.s32.totalorder %s132, 1
        %s136 = scalar_select %p135, %s132, 1
        %s137 = smul.addr %s134, 4
        %s138 = sadd.s32 %s136, %s137
        %s139 = smul.addr %s138, 8
        %s140 = scalar_lea.vmem %s1, %s139
        %s141 = smul.u32 2, %s16
      $region24: #{sgc_block.3} parent=15 // pred_fallthru
        _
    $region16: #{sgc_block.3} parent=5 // pred_fallthru
      _
    %p142 = scmp.le.s32.totalorder 1, %s8
    %p143 = scmp.lt.s32.totalorder %s8, 3
    %p144 = pnand %p142, %p143
    %p145 = pneg %p144
    // Predicated region
    $region25: #{sgc_block.3} parent=5 // pred_check
      _
    $region26: #{sgc_block.3} parent=5 // pred_check_branch
      %147 = sbr.rel (%p144) target = $region28
    $region27: #{sgc_block.3} parent=5 // pred_region
      %s148 = ssub.s32 %s8, 1
      %p149 = scmp.lt.s32.totalorder %s17, 1
      %s150 = scalar_select %p149, %s17, 1
      %s151 = smul.addr %s150, 2
      %s152 = smul.addr %s151, 8
      %s153 = scalar_lea.vmem %s0, %s152
      %p154 = pneg %p46
      %p155 = pneg %p43
      %s156 = smul.u32 2, %s18
      %p157 = scmp.lt.s32.totalorder %s17, 1
      %s158 = scalar_select %p157, %s17, 1
      %p159 = scmp.lt.s32.totalorder %s156, 1
      %s160 = scalar_select %p159, %s156, 1
      %s161 = smul.addr %s158, 4
      %s162 = sadd.s32 %s160, %s161
      %s163 = smul.addr %s162, 8
      %s164 = scalar_lea.vmem %s1, %s163
      %p165 = pneg %p74
      %p166 = pneg %p71
      %p167 = pneg %p102
      %p168 = pneg %p99
      %s169 = smul.u32 2, %s18
      %p170 = scmp.lt.s32.totalorder %s17, 1
      %s171 = scalar_select %p170, %s17, 1
      %p172 = scmp.lt.s32.totalorder %s169, 1
      %s173 = scalar_select %p172, %s169, 1
      %s174 = smul.addr %s171, 4
      %s175 = sadd.s32 %s173, %s174
      %s176 = smul.addr %s175, 8
      %s177 = scalar_lea.vmem %s2, %s176
      %p178 = scmp.lt.s32.totalorder %s17, 1
      %s179 = scalar_select %p178, %s17, 1
      %s180 = smul.addr %s179, 2
      %s181 = smul.addr %s180, 8
      %s182 = scalar_lea.vmem %s0, %s181
      %s183 = smul.u32 2, %s18
      %p184 = scmp.lt.s32.totalorder %s17, 1
      %s185 = scalar_select %p184, %s17, 1
      %p186 = scmp.lt.s32.totalorder %s183, 1
      %s187 = scalar_select %p186, %s183, 1
      %s188 = smul.addr %s185, 4
      %s189 = sadd.s32 %s187, %s188
      %s190 = smul.addr %s189, 8
      %s191 = scalar_lea.vmem %s1, %s190
      %s192 = smul.u32 2, %s18
      %s193 = smul.u32 2, %s18
      %p194 = scmp.lt.s32.totalorder %s17, 1
      %s195 = scalar_select %p194, %s17, 1
      %p196 = scmp.lt.s32.totalorder %s193, 1
      %s197 = scalar_select %p196, %s193, 1
      %s198 = smul.addr %s195, 4
      %s199 = sadd.s32 %s197, %s198
      %s200 = smul.addr %s199, 8
      %s201 = scalar_lea.vmem %s2, %s200
      %s202 = smul.u32 2, %s18
      %v203 = vld [vmem:[%s182] sm:$0xff]
      %v204 = vld [vmem:[%s182 + $0x8] sm:$0xff]
      %v205 = vld [vmem:[%s191] sm:$0xff]
      %v206 = vld [vmem:[%s191 + $0x8] sm:$0xff]
      %v207 = vld [vmem:[%s191 + $0x10] sm:$0xff]
      %v208 = vld [vmem:[%s191 + $0x18] sm:$0xff]
      %210 = vset.pattern.permute.xlu0 0
      %211 = vperm.xlu0 %210, %v203
      %v212 = vpop.permute.xlu0 %211
      %215 = vset.pattern.permute.xlu0 0
      %216 = vperm.xlu0 %215, %v204
      %v217 = vpop.permute.xlu0 %216
      %v219 = vadd.f32 %v205, %v212
      %v220 = vadd.f32 %v206, %v212
      %v221 = vadd.f32 %v207, %v217
      %v222 = vadd.f32 %v208, %v217
      %223 = vst [vmem:[%s201] sm:$0xff] %v219
      %224 = vst [vmem:[%s201 + $0x8] sm:$0xff] %v220
      %225 = vst [vmem:[%s201 + $0x10] sm:$0xff] %v221
      %226 = vst [vmem:[%s201 + $0x18] sm:$0xff] %v222
      %s227 = smul.u32 2, %s18
      %p228 = scmp.lt.s32.totalorder %s17, 1
      %s229 = scalar_select %p228, %s17, 1
      %p230 = scmp.lt.s32.totalorder %s227, 1
      %s231 = scalar_select %p230, %s227, 1
      %s232 = smul.addr %s229, 4
      %s233 = sadd.s32 %s231, %s232
      %s234 = smul.addr %s233, 8
      %s235 = scalar_lea.vmem %s2, %s234
      // Predicated region
      $region29: #{sgc_block.3} parent=27 // pred_check
        %p236 = pneg %p99
      $region30: #{sgc_block.3} parent=27 // pred_check_branch
        %238 = sbr.rel (%p236) target = $region32
      $region31: #{sgc_block.3} parent=27 // pred_region
        %s239 = smul.u32 2, %s18
      $region32: #{sgc_block.3} parent=27 // pred_fallthru
        _
    $region28: #{sgc_block.3} parent=5 // pred_fallthru
      _
    %p240 = scmp.le.s32.totalorder 2, %s8
    // Predicated region
    $region33: #{sgc_block.3} parent=5 // pred_check
      %p241 = pneg %p240
    $region34: #{sgc_block.3} parent=5 // pred_check_branch
      %243 = sbr.rel (%p241) target = $region36
    $region35: #{sgc_block.3} parent=5 // pred_region
      %s244 = ssub.s32 %s8, 2
      // Predicated region
      $region37: #{sgc_block.3} parent=35 // pred_check
        %p245 = pneg %p105
      $region38: #{sgc_block.3} parent=35 // pred_check_branch
        %247 = sbr.rel (%p245) target = $region40
      $region39: #{sgc_block.3} parent=35 // pred_region
        %s248 = smul.u32 2, %s20
        %p249 = scmp.lt.s32.totalorder %s19, 1
        %s250 = scalar_select %p249, %s19, 1
        %p251 = scmp.lt.s32.totalorder %s248, 1
        %s252 = scalar_select %p251, %s248, 1
        %s253 = smul.addr %s250, 4
        %s254 = sadd.s32 %s252, %s253
        %s255 = smul.addr %s254, 8
        %s256 = scalar_lea.vmem %s2, %s255
      $region40: #{sgc_block.3} parent=35 // pred_fallthru
        _
    $region36: #{sgc_block.3} parent=5 // pred_fallthru
      _
  $region6: #{sgc_block.3} parent=0 // loop_footer
    %s12 = sadd.s32 1, %s8
  $region7: #{sgc_block.3} parent=0 // loop_footer_branch
    %7 = sbr.rel target = $region3
  $region8: #{sgc_block.3} parent=0 // loop_exit
    _

// kernel: sgc_block.2
$region0: #{sgc_block.2}
  #allocation0 [shape = 'u32[]', space=smem, size = 0x4, offset = 0x4, fixed_abs, tag = 'smem constant byte address 0x4 - core index']
  #allocation1 [shape = 'u32[144,128]{1,0:T(1,128)}', space=vmem, size = 0x12000, scoped, tag = 'internal scratch']
  %s0 = inlined_call_operand.vmem [shape: f32[2,8,128], index: 0, kind: input, shape index: {}]
  %s1 = inlined_call_operand.vmem [shape: f32[8,1], index: 1, kind: input, shape index: {}]
  %s2 = inlined_call_operand.vmem [shape: f32[8,4], index: 2, kind: input, shape index: {}]
  %s3 = inlined_call_operand.vmem [shape: f32[16,4], index: 3, kind: input, shape index: {}]
  %s4 = inlined_call_operand.vmem [shape: f32[2,16,1], index: 4, kind: output, shape index: {}]
  %s5 = sld [smem:[#allocation0]]
  $region49: #{sgc_block.2} parent=0
    _
  %s7 = ssub.s32 1, %s5
  %s8 = scalar_select 0, %s7, %s5
  loop: start=0, step=1, limit=4
  $region2: #{sgc_block.2} parent=0 // loop_pre_header
    _
  $region3: #{sgc_block.2} parent=0 // loop_header
    %s10 = sphi 0, %s14
    %p11 = scmp.ge.s32.totalorder %s10, 4
    %s20 = sphi 0, %s22
    %s23 = sphi 0, %s20
    %s24 = sphi 0, %s23
    %s40 = sphi 0, %s24
    %s44 = sphi 0, %s44
    %s46 = sphi 0, %s44
    %s47 = sphi 0, %s46
    %s61 = sphi 0, %s47
    %s65 = sphi 0, %s65
    %s67 = sphi 0, %s65
    %s68 = sphi 0, %s67
    %s82 = sphi 0, %s68
    %s86 = sphi 0, %s86
    %s88 = sphi 0, %s86
    %s89 = sphi 0, %s88
    %s103 = sphi 0, %s89
    %s109 = sphi 0, %s111
    %s112 = sphi 0, %s109
    %s113 = sphi 0, %s112
    %s129 = sphi 0, %s113
  $region4: #{sgc_block.2} parent=0 // loop_header_branch
    %13 = sbr.rel (%p11) target = $region8
  $region5: #{sgc_block.2} parent=0 // loop_body
    %s15 = ssub.s32 %s10, 1
    %s16 = ssub.s32 %s10, 2
    %s17 = sadd.s32 %s10, 1
    %s18 = ssub.s32 %s10, %s17
    %p19 = scmp.eq.s32.totalorder %s18, 0
    %s21 = sadd.s32 %s20, 1
    %s22 = scalar_select %p19, %s20, %s21
    %p25 = pneg %p19
    %p26 = scmp.eq.s32.totalorder %s10, 1
    %p27 = por %p25, %p26
    %p28 = scmp.ne.s32.totalorder %s20, %s23
    %p29 = scmp.eq.s32.totalorder %s10, 0
    %p30 = por %p28, %p29
    %p31 = scmp.ne.s32.totalorder %s20, %s23
    %p32 = scmp.eq.s32.totalorder %s15, 1
    %p33 = por %p31, %p32
    %p34 = scmp.ne.s32.totalorder %s23, %s24
    %p35 = scmp.eq.s32.totalorder %s15, 0
    %p36 = por %p34, %p35
    %p37 = scmp.ne.s32.totalorder %s23, %s24
    %p38 = scmp.eq.s32.totalorder %s16, 1
    %p39 = por %p37, %p38
    %p41 = scmp.ne.s32.totalorder %s24, %s40
    %p42 = scmp.eq.s32.totalorder %s16, 0
    %p43 = por %p41, %p42
    %s45 = sadd.s32 %s44, 1
    %p48 = scmp.eq.s32.totalorder %s10, 1
    %p49 = scmp.ne.s32.totalorder %s44, %s46
    %p50 = scmp.eq.s32.totalorder %s10, 0
    %p51 = por %p49, %p50
    %p52 = scmp.ne.s32.totalorder %s44, %s46
    %p53 = scmp.eq.s32.totalorder %s15, 1
    %p54 = por %p52, %p53
    %p55 = scmp.ne.s32.totalorder %s46, %s47
    %p56 = scmp.eq.s32.totalorder %s15, 0
    %p57 = por %p55, %p56
    %p58 = scmp.ne.s32.totalorder %s46, %s47
    %p59 = scmp.eq.s32.totalorder %s16, 1
    %p60 = por %p58, %p59
    %p62 = scmp.ne.s32.totalorder %s47, %s61
    %p63 = scmp.eq.s32.totalorder %s16, 0
    %p64 = por %p62, %p63
    %s66 = sadd.s32 %s65, 1
    %p69 = scmp.eq.s32.totalorder %s10, 1
    %p70 = scmp.ne.s32.totalorder %s65, %s67
    %p71 = scmp.eq.s32.totalorder %s10, 0
    %p72 = por %p70, %p71
    %p73 = scmp.ne.s32.totalorder %s65, %s67
    %p74 = scmp.eq.s32.totalorder %s15, 1
    %p75 = por %p73, %p74
    %p76 = scmp.ne.s32.totalorder %s67, %s68
    %p77 = scmp.eq.s32.totalorder %s15, 0
    %p78 = por %p76, %p77
    %p79 = scmp.ne.s32.totalorder %s67, %s68
    %p80 = scmp.eq.s32.totalorder %s16, 1
    %p81 = por %p79, %p80
    %p83 = scmp.ne.s32.totalorder %s68, %s82
    %p84 = scmp.eq.s32.totalorder %s16, 0
    %p85 = por %p83, %p84
    %s87 = sadd.s32 %s86, 1
    %p90 = scmp.eq.s32.totalorder %s10, 1
    %p91 = scmp.ne.s32.totalorder %s86, %s88
    %p92 = scmp.eq.s32.totalorder %s10, 0
    %p93 = por %p91, %p92
    %p94 = scmp.ne.s32.totalorder %s86, %s88
    %p95 = scmp.eq.s32.totalorder %s15, 1
    %p96 = por %p94, %p95
    %p97 = scmp.ne.s32.totalorder %s88, %s89
    %p98 = scmp.eq.s32.totalorder %s15, 0
    %p99 = por %p97, %p98
    %p100 = scmp.ne.s32.totalorder %s88, %s89
    %p101 = scmp.eq.s32.totalorder %s16, 1
    %p102 = por %p100, %p101
    %p104 = scmp.ne.s32.totalorder %s89, %s103
    %p105 = scmp.eq.s32.totalorder %s16, 0
    %p106 = por %p104, %p105
    %s107 = ssub.s32 %s10, %s17
    %p108 = scmp.eq.s32.totalorder %s107, 0
    %s110 = sadd.s32 %s109, 1
    %s111 = scalar_select %p108, %s109, %s110
    %p114 = pneg %p108
    %p115 = scmp.eq.s32.totalorder %s10, 1
    %p116 = por %p114, %p115
    %p117 = scmp.ne.s32.totalorder %s109, %s112
    %p118 = scmp.eq.s32.totalorder %s10, 0
    %p119 = por %p117, %p118
    %p120 = scmp.ne.s32.totalorder %s109, %s112
    %p121 = scmp.eq.s32.totalorder %s15, 1
    %p122 = por %p120, %p121
    %p123 = scmp.ne.s32.totalorder %s112, %s113
    %p124 = scmp.eq.s32.totalorder %s15, 0
    %p125 = por %p123, %p124
    %p126 = scmp.ne.s32.totalorder %s112, %s113
    %p127 = scmp.eq.s32.totalorder %s16, 1
    %p128 = por %p126, %p127
    %p130 = scmp.ne.s32.totalorder %s113, %s129
    %p131 = scmp.eq.s32.totalorder %s16, 0
    %p132 = por %p130, %p131
    %p133 = scmp.le.s32.totalorder 1, %s10
    %p134 = scmp.lt.s32.totalorder %s10, 3
    %p135 = pnand %p133, %p134
    %p136 = pneg %p135
    // Predicated region
    $region9: #{sgc_block.2} parent=5 // pred_check
      _
    $region10: #{sgc_block.2} parent=5 // pred_check_branch
      %138 = sbr.rel (%p135) target = $region12
    $region11: #{sgc_block.2} parent=5 // pred_region
      %s139 = ssub.s32 %s10, 1
      // Predicated region
      $region13: #{sgc_block.2} parent=11 // pred_check
        %p140 = pneg %p57
      $region14: #{sgc_block.2} parent=11 // pred_check_branch
        %142 = sbr.rel (%p140) target = $region16
      $region15: #{sgc_block.2} parent=11 // pred_region
        _
      $region16: #{sgc_block.2} parent=11 // pred_fallthru
        _
      // Predicated region
      $region17: #{sgc_block.2} parent=11 // pred_check
        %p143 = pneg %p78
      $region18: #{sgc_block.2} parent=11 // pred_check_branch
        %145 = sbr.rel (%p143) target = $region20
      $region19: #{sgc_block.2} parent=11 // pred_region
        _
      $region20: #{sgc_block.2} parent=11 // pred_fallthru
        _
      // Predicated region
      $region21: #{sgc_block.2} parent=11 // pred_check
        %p146 = pneg %p99
      $region22: #{sgc_block.2} parent=11 // pred_check_branch
        %148 = sbr.rel (%p146) target = $region24
      $region23: #{sgc_block.2} parent=11 // pred_region
        _
      $region24: #{sgc_block.2} parent=11 // pred_fallthru
        _
    $region12: #{sgc_block.2} parent=5 // pred_fallthru
      _
    %p149 = scmp.lt.s32.totalorder %s10, 2
    // Predicated region
    $region25: #{sgc_block.2} parent=5 // pred_check
      %p150 = pneg %p149
    $region26: #{sgc_block.2} parent=5 // pred_check_branch
      %152 = sbr.rel (%p150) target = $region28
    $region27: #{sgc_block.2} parent=5 // pred_region
      // Predicated region
      $region29: #{sgc_block.2} parent=27 // pred_check
        %p153 = pneg %p30
      $region30: #{sgc_block.2} parent=27 // pred_check_branch
        %155 = sbr.rel (%p153) target = $region32
      $region31: #{sgc_block.2} parent=27 // pred_region
        %p156 = scmp.lt.s32.totalorder %s10, 1
        %s157 = scalar_select %p156, %s10, 1
        %s158 = smul.addr %s157, 8
        %s159 = scalar_lea.vmem %s0, %s158
      $region32: #{sgc_block.2} parent=27 // pred_fallthru
        _
    $region28: #{sgc_block.2} parent=5 // pred_fallthru
      _
    %p160 = scmp.le.s32.totalorder 1, %s10
    %p161 = scmp.lt.s32.totalorder %s10, 3
    %p162 = pnand %p160, %p161
    %p163 = pneg %p162
    // Predicated region
    $region33: #{sgc_block.2} parent=5 // pred_check
      _
    $region34: #{sgc_block.2} parent=5 // pred_check_branch
      %165 = sbr.rel (%p162) target = $region36
    $region35: #{sgc_block.2} parent=5 // pred_region
      %s166 = ssub.s32 %s10, 1
      %p167 = scmp.lt.s32.totalorder %s15, 1
      %s168 = scalar_select %p167, %s15, 1
      %s169 = smul.addr %s168, 8
      %s170 = scalar_lea.vmem %s0, %s169
      %p171 = pneg %p36
      %p172 = pneg %p33
      %p173 = pneg %p57
      %p174 = pneg %p54
      %p175 = pneg %p78
      %p176 = pneg %p75
      %p177 = pneg %p99
      %p178 = pneg %p96
      %p179 = pneg %p125
      %p180 = pneg %p122
      %p181 = scmp.lt.s32.totalorder %s15, 1
      %s182 = scalar_select %p181, %s15, 1
      %s183 = smul.addr %s182, 2
      %s184 = smul.addr %s183, 8
      %s185 = scalar_lea.vmem %s4, %s184
      %p186 = scmp.lt.s32.totalorder %s15, 1
      %s187 = scalar_select %p186, %s15, 1
      %s188 = smul.addr %s187, 8
      %s189 = scalar_lea.vmem %s0, %s188
      %p190 = scmp.lt.s32.totalorder %s15, 1
      %s191 = scalar_select %p190, %s15, 1
      %s192 = smul.addr %s191, 2
      %s193 = smul.addr %s192, 8
      %s194 = scalar_lea.vmem %s4, %s193
      %v195 = vld [vmem:[%s189] sm:$0xff]
      %v196 = vld [vmem:[%s1] sm:$0xff]
      %198 = vset.pattern.permute.xlu0 0
      %199 = vperm.xlu0 %198, %v196
      %v200 = vpop.permute.xlu0 %199
      %v202 = vmul.f32 %v200, %v195
      %v203 = vrot.slane %v202, 4
      %v204 = vadd.f32 %v202, %v203
      %v205 = vrot.slane %v204, 2
      %v206 = vadd.f32 %v204, %v205
      %v207 = vrot.slane %v206, 1
      %v208 = vadd.f32 %v206, %v207
      %v209 = vlaneseq
      %v210 = vand.u32 %v209, 127
      %vm211 = vcmp.lt.s32.totalorder %v210, 64
      %v212 = vsel %vm211, %v208, -inf
      %213 = vmax.xlane.f32.xlu0 %v212
      %v214 = vpop.xlane.xlu0 %213
      %v215 = vsub.f32 %v212, %v214
      %v216 = vmul.f32 %v215, 1.442695
      %v217 = vpow.pop %v216
      %218 = vadd.xlane.f32.xlu0 %v217
      %v219 = vpop.xlane.xlu0 %218
      %v220 = vrcp.pop %v219
      %v221 = vmul.f32 %v217, %v220
      %v222 = vmul.f32 %v195, %v221
      %223 = vadd.xlane.f32.xlu0 %v222
      %v224 = vpop.xlane.xlu0 %223
      %v225 = vld [vmem:[%s2] sm:$0xff]
      %v226 = vmul.f32 %v225, %v224
      %vm227 = vcmask 31744
      %v228 = vsel %vm227, %v226, 0.0
      %v229 = vrot.slane %v228, 4
      %v230 = vadd.f32 %v228, %v229
      %v231 = vrot.slane %v230, 2
      %v232 = vadd.f32 %v230, %v231
      %v233 = vrot.slane %v232, 1
      %v234 = vadd.f32 %v232, %v233
      %vm235 = vcmp.ge.f32.partialorder %v234, 0.0
      %v236 = vmul.f32 %v234, 0.2
      %v237 = vsel %vm235, %v234, %v236
      %v238 = vld [vmem:[%s3] sm:$0xff]
      %v239 = vld [vmem:[%s3 + $0x8] sm:$0xff]
      %v240 = vmul.f32 %v238, %v237
      %v241 = vmul.f32 %v239, %v237
      %v242 = vsel %vm227, %v240, 0.0
      %243 = vadd.xlane.f32.xlu0 %v242
      %v244 = vpop.xlane.xlu0 %243
      %v245 = vsel %vm227, %v241, 0.0
      %246 = vadd.xlane.f32.xlu0 %v245
      %v247 = vpop.xlane.xlu0 %246
      %vm248 = vcmask 7168
      %249 = vst.msk [vmem:[%s194] sm:$0xff] %vm248, %v244
      %250 = vst.msk [vmem:[%s194 + $0x8] sm:$0xff] %vm248, %v247
      %p251 = scmp.lt.s32.totalorder %s15, 1
      %s252 = scalar_select %p251, %s15, 1
      %s253 = smul.addr %s252, 2
      %s254 = smul.addr %s253, 8
      %s255 = scalar_lea.vmem %s4, %s254
      // Predicated region
      $region37: #{sgc_block.2} parent=35 // pred_check
        %p256 = pneg %p122
      $region38: #{sgc_block.2} parent=35 // pred_check_branch
        %258 = sbr.rel (%p256) target = $region40
      $region39: #{sgc_block.2} parent=35 // pred_region
        _
      $region40: #{sgc_block.2} parent=35 // pred_fallthru
        _
    $region36: #{sgc_block.2} parent=5 // pred_fallthru
      _
    %p259 = scmp.le.s32.totalorder 2, %s10
    // Predicated region
    $region41: #{sgc_block.2} parent=5 // pred_check
      %p260 = pneg %p259
    $region42: #{sgc_block.2} parent=5 // pred_check_branch
      %262 = sbr.rel (%p260) target = $region44
    $region43: #{sgc_block.2} parent=5 // pred_region
      %s263 = ssub.s32 %s10, 2
      // Predicated region
      $region45: #{sgc_block.2} parent=43 // pred_check
        %p264 = pneg %p128
      $region46: #{sgc_block.2} parent=43 // pred_check_branch
        %266 = sbr.rel (%p264) target = $region48
      $region47: #{sgc_block.2} parent=43 // pred_region
        %p267 = scmp.lt.s32.totalorder %s16, 1
        %s268 = scalar_select %p267, %s16, 1
        %s269 = smul.addr %s268, 2
        %s270 = smul.addr %s269, 8
        %s271 = scalar_lea.vmem %s4, %s270
      $region48: #{sgc_block.2} parent=43 // pred_fallthru
        _
    $region44: #{sgc_block.2} parent=5 // pred_fallthru
      _
  $region6: #{sgc_block.2} parent=0 // loop_footer
    %s14 = sadd.s32 1, %s10
  $region7: #{sgc_block.2} parent=0 // loop_footer_branch
    %9 = sbr.rel target = $region3
  $region8: #{sgc_block.2} parent=0 // loop_exit
    _

</llo_original>
